<compile_context>
chip_gen: v5e
topology: v5e:2x2
jax: 0.10.0
libtpu: 0.0.40
codegen_flags: <defaults>
</compile_context>

<pallas_src>
import jax
import jax.numpy as jnp
from jax import lax
from jax.experimental import pallas as pl
from jax.experimental.pallas import tpu as pltpu


CHUNK = 4096            # lanes per inner compute step (multiple of 128)
MAX_TILE_B = 131072     # max batch rows per grid step (multiple of CHUNK)
MIN_SPLIT_B = 4 * CHUNK  # enough work to force >=2 grid tiles (v7x: 2 TensorCores)


def _cdiv(a, b):
    return -(-a // b)


def _round_up(n, m):
    return _cdiv(n, m) * m


def _plan_tiles(B):
    """Pick (tile_b, chunk, n_tiles) with tile_b % chunk == 0 and n_tiles * tile_b >= B."""
    if B <= CHUNK:
        tile_b = _round_up(B, 128)
        chunk = tile_b
        n_tiles = 1
    else:
        n_tiles = max(2 if B >= MIN_SPLIT_B else 1, _cdiv(B, MAX_TILE_B))
        tile_b = min(MAX_TILE_B, _round_up(_cdiv(B, n_tiles), CHUNK))
        chunk = CHUNK
        n_tiles = _cdiv(B, tile_b)
    return tile_b, chunk, n_tiles


def _make_kernel(chunk, n_chunks):
    def gridnet_kernel(xT_ref, w1a_ref, w2_ref, b2_ref, o_ref, xaug_ref):
        # xT: (2, tile_b)  w1a: (64, 3) = [W1 | b1]  w2: (4, 64)  b2: (4, 1)
        # o:  (4, tile_b)  xaug scratch: (3, chunk)
        # Ones row multiplies the bias column of w1a -> bias-add happens on the MXU.
        # Re-written every grid step (cheap) so it is valid under "parallel" core sharding.
        xaug_ref[2:3, :] = jnp.ones((1, chunk), jnp.float32)
        w1a = w1a_ref[...]
        w2 = w2_ref[...]
        b2 = b2_ref[...]

        def body(c, carry):
            start = pl.multiple_of(c * chunk, 128)
            xaug_ref[0:2, :] = xT_ref[:, pl.ds(start, chunk)]
            h = jnp.dot(w1a, xaug_ref[...], preferred_element_type=jnp.float32)  # (64, chunk)
            h = jnp.maximum(h, 0.0)                                               # ReLU only
            y = jnp.dot(w2, h, preferred_element_type=jnp.float32) + b2          # (4, chunk)
            o_ref[:, pl.ds(start, chunk)] = y.astype(o_ref.dtype)
            return carry

        lax.fori_loop(0, n_chunks, body, 0, unroll=(n_chunks <= 4))

    return gridnet_kernel


def gridnet_forward_fb(xT, w1, b1, w2, b2):
    """Feature-major forward: xT is (2, B), returns (4, B).  No wrapper relayout passes
    (apart from a single jnp.pad of the batch tail when B is not tile-aligned)."""
    B = xT.shape[1]
    tile_b, chunk, n_tiles = _plan_tiles(B)
    Bp = tile_b * n_tiles

    xTp = xT.astype(jnp.float32)
    if Bp != B:
        xTp = jnp.pad(xTp, ((0, 0), (0, Bp - B)))   # single pass, only for the ragged tail

    # Weights in native PyTorch (out, in) layout; bias folded as an extra input column.
    w1a = jnp.concatenate(
        [w1.astype(jnp.float32), b1.reshape(64, 1).astype(jnp.float32)], axis=1)  # (64, 3)
    w2c = w2.astype(jnp.float32)                    # (4, 64)
    b2c = b2.reshape(4, 1).astype(jnp.float32)      # (4, 1), broadcast over lanes

    param_bytes = (64 * 3 + 4 * 64 + 4) * 4
    cost = pl.CostEstimate(
        flops=896 * Bp,                              # 2*(3*64) + 2*(64*4) per batch row
        transcendentals=0,
        bytes_accessed=24 * Bp + param_bytes,        # 8 B in + 16 B out per row + params
    )

    # VMEM budget: x block (8-sublane padded) 32*tile_b B + out block 32*tile_b B, each
    # double-buffered = 128*tile_b, plus chunk-sized intermediates / weights / internal scratch.
    vmem_limit = int(min(128 * tile_b + (16 << 20), 96 << 20))

    oT = pl.pallas_call(
        _make_kernel(chunk, tile_b // chunk),
        out_shape=jax.ShapeDtypeStruct((4, Bp), jnp.float32),
        grid=(n_tiles,),
        in_specs=[
            pl.BlockSpec((2, tile_b), lambda i: (0, i)),   # x tile, pipelined (double-buffered)
            pl.BlockSpec((64, 3), lambda i: (0, 0)),       # weights resident in VMEM
            pl.BlockSpec((4, 64), lambda i: (0, 0)),
            pl.BlockSpec((4, 1), lambda i: (0, 0)),
        ],
        out_specs=pl.BlockSpec((4, tile_b), lambda i: (0, i)),  # lane-dense, unmasked stores
        scratch_shapes=[pltpu.VMEM((3, chunk), jnp.float32)],   # augmented [x; 1] operand
        compiler_params=pltpu.CompilerParams(
            dimension_semantics=("parallel",),          # v7x: shard batch over 2 TensorCores
            vmem_limit_bytes=vmem_limit,
        ),
        cost_estimate=cost,
    )(xTp, w1a, w2c, b2c)

    return oT if Bp == B else oT[:, :B]


def gridnet_forward(x, w1, b1, w2, b2):
    """PyTorch-facing forward.  x: (B, 2) -> (B, 4); weights in PyTorch (out, in) layout.
    The transposes here are the only relayout passes; use gridnet_forward_fb to avoid them
    when the surrounding model can keep activations feature-major."""
    oT = gridnet_forward_fb(x.T, w1, b1, w2, b2)
    return oT.T


def init_params(key):
    """Deterministic init mimicking PyTorch nn.Linear defaults (uniform +/- 1/sqrt(fan_in)),
    weights stored in the PyTorch (out_features, in_features) layout."""
    k1, k2, k3, k4 = jax.random.split(key, 4)
    bound1 = 1.0 / jnp.sqrt(2.0)    # fc1 fan_in = 2
    bound2 = 1.0 / jnp.sqrt(64.0)   # fc3 fan_in = 64
    w1 = jax.random.uniform(k1, (64, 2), jnp.float32, -bound1, bound1)
    b1 = jax.random.uniform(k2, (64,), jnp.float32, -bound1, bound1)
    w2 = jax.random.uniform(k3, (4, 64), jnp.float32, -bound2, bound2)
    b2 = jax.random.uniform(k4, (4,), jnp.float32, -bound2, bound2)
    return w1, b1, w2, b2


def _reference(x, w1, b1, w2, b2):
    return jnp.maximum(x @ w1.T + b1, 0.0) @ w2.T + b2


if __name__ == "__main__":
    key = jax.random.PRNGKey(0)
    kx, kp = jax.random.split(key)
    w1, b1, w2, b2 = init_params(kp)

    # Small example batch, consistent with the module (GridNet takes 2-feature states).
    B = 8
    x = jax.random.normal(kx, (B, 2), jnp.float32)
    out = jax.block_until_ready(gridnet_forward(x, w1, b1, w2, b2))
    ref = _reference(x, w1, b1, w2, b2)
    assert out.shape == (B, 4)
    assert jnp.allclose(out, ref, atol=1e-5, rtol=1e-5)

    # Exercise batch padding (B=1000) and the multi-chunk inner loop (B=9000).
    for B2 in (1000, 9000):
        x2 = jax.random.normal(jax.random.PRNGKey(B2), (B2, 2), jnp.float32)
        out2 = jax.block_until_ready(gridnet_forward(x2, w1, b1, w2, b2))
        ref2 = _reference(x2, w1, b1, w2, b2)
        assert out2.shape == (B2, 4)
        assert jnp.allclose(out2, ref2, atol=1e-5, rtol=1e-5)

    print("KERNEL_OK")
</pallas_src>

<mosaic_0001>
module attributes {stable_mosaic.version = 11 : i64} {
  func.func @gridnet_kernel(%arg0: i32, %arg1: memref<2x128xf32, #tpu.memory_space<vmem>>, %arg2: memref<64x3xf32, #tpu.memory_space<vmem>>, %arg3: memref<4x64xf32, #tpu.memory_space<vmem>>, %arg4: memref<4x1xf32, #tpu.memory_space<vmem>>, %arg5: memref<4x128xf32, #tpu.memory_space<vmem>>, %arg6: memref<3x128xf32, #tpu.memory_space<vmem>>) attributes {dimension_semantics = [#tpu.dimension_semantics<parallel>], iteration_bounds = array<i64: 1>, scalar_prefetch = 0 : i64, scratch_operands = 1 : i64, tpu.core_type = #tpu.core_type<tc>, window_params = [{transform_indices = @transform_0, window_bounds = array<i64: 2, 128>}, {pipeline_mode = #tpu.pipeline_mode<synchronous>, transform_indices = @transform_1, window_bounds = array<i64: 64, 3>}, {pipeline_mode = #tpu.pipeline_mode<synchronous>, transform_indices = @transform_2, window_bounds = array<i64: 4, 64>}, {pipeline_mode = #tpu.pipeline_mode<synchronous>, transform_indices = @transform_3, window_bounds = array<i64: 4, 1>}, {transform_indices = @transform_4, window_bounds = array<i64: 4, 128>}]} {
    %cst = arith.constant 1.000000e+00 : f32
    %0 = vector.broadcast %cst : f32 to vector<1x128xf32>
    %c2 = arith.constant 2 : index
    %c0 = arith.constant 0 : index
    %1 = vector.load %arg6[%c2, %c0] : memref<3x128xf32, #tpu.memory_space<vmem>>, vector<1x128xf32>
    tpu.vector_store %arg6[%c2, %c0], %0 {strides = array<i32>} : memref<3x128xf32, #tpu.memory_space<vmem>>, vector<1x128xf32>,
    %c0_0 = arith.constant 0 : index
    %c0_1 = arith.constant 0 : index
    %2 = vector.load %arg2[%c0_0, %c0_1] : memref<64x3xf32, #tpu.memory_space<vmem>>, vector<64x3xf32>
    %c0_2 = arith.constant 0 : index
    %c0_3 = arith.constant 0 : index
    %3 = vector.load %arg3[%c0_2, %c0_3] : memref<4x64xf32, #tpu.memory_space<vmem>>, vector<4x64xf32>
    %c0_4 = arith.constant 0 : index
    %c0_5 = arith.constant 0 : index
    %4 = vector.load %arg4[%c0_4, %c0_5] : memref<4x1xf32, #tpu.memory_space<vmem>>, vector<4x1xf32>
    %c0_i32 = arith.constant 0 : i32
    %c128_i32 = arith.constant 128 : i32
    %5 = arith.muli %c0_i32, %c128_i32 : i32
    %6 = tpu.assume_multiple %5, 128 : i32
    %c0_6 = arith.constant 0 : index
    %7 = arith.index_cast %6 : i32 to index
    %8 = vector.load %arg1[%c0_6, %7] : memref<2x128xf32, #tpu.memory_space<vmem>>, vector<2x128xf32>
    %c0_7 = arith.constant 0 : index
    %c0_8 = arith.constant 0 : index
    %9 = vector.load %arg6[%c0_7, %c0_8] : memref<3x128xf32, #tpu.memory_space<vmem>>, vector<2x128xf32>
    tpu.vector_store %arg6[%c0_7, %c0_8], %8 {strides = array<i32>} : memref<3x128xf32, #tpu.memory_space<vmem>>, vector<2x128xf32>,
    %c0_9 = arith.constant 0 : index
    %c0_10 = arith.constant 0 : index
    %10 = vector.load %arg6[%c0_9, %c0_10] : memref<3x128xf32, #tpu.memory_space<vmem>>, vector<3x128xf32>
    %cst_11 = arith.constant dense<0.000000e+00> : vector<64x128xf32>
    %11 = tpu.matmul %2, %10, %cst_11 {dimension_numbers = #tpu.dot_dimension_numbers<[1], [0], [0], [1], [0, 0, 1, 1], [], []>} : vector<64x3xf32>, vector<3x128xf32>, vector<64x128xf32> -> vector<64x128xf32>
    %cst_12 = arith.constant 0.000000e+00 : f32
    %12 = vector.broadcast %cst_12 : f32 to vector<64x128xf32>
    %13 = arith.maximumf %11, %12 : vector<64x128xf32>
    %cst_13 = arith.constant dense<0.000000e+00> : vector<4x128xf32>
    %14 = tpu.matmul %3, %13, %cst_13 {dimension_numbers = #tpu.dot_dimension_numbers<[1], [0], [0], [1], [0, 0, 1, 1], [], []>} : vector<4x64xf32>, vector<64x128xf32>, vector<4x128xf32> -> vector<4x128xf32>
    %15 = vector.broadcast %4 : vector<4x1xf32> to vector<4x128xf32>
    %16 = arith.addf %14, %15 : vector<4x128xf32>
    %c0_14 = arith.constant 0 : index
    %17 = arith.index_cast %6 : i32 to index
    %18 = vector.load %arg5[%c0_14, %17] : memref<4x128xf32, #tpu.memory_space<vmem>>, vector<4x128xf32>
    tpu.vector_store %arg5[%c0_14, %17], %16 {strides = array<i32>} : memref<4x128xf32, #tpu.memory_space<vmem>>, vector<4x128xf32>,
    %c1_i32 = arith.constant 1 : i32
    return
  }
  func.func @transform_0(%arg0: i32) -> (i32, i32) {
    %c0_i32 = arith.constant 0 : i32
    %c0_i32_0 = arith.constant 0 : i32
    return %c0_i32, %arg0 : i32, i32
  }
  func.func @transform_1(%arg0: i32) -> (i32, i32) {
    %c0_i32 = arith.constant 0 : i32
    %c0_i32_0 = arith.constant 0 : i32
    %c0_i32_1 = arith.constant 0 : i32
    return %c0_i32, %c0_i32_0 : i32, i32
  }
  func.func @transform_2(%arg0: i32) -> (i32, i32) {
    %c0_i32 = arith.constant 0 : i32
    %c0_i32_0 = arith.constant 0 : i32
    %c0_i32_1 = arith.constant 0 : i32
    return %c0_i32, %c0_i32_0 : i32, i32
  }
  func.func @transform_3(%arg0: i32) -> (i32, i32) {
    %c0_i32 = arith.constant 0 : i32
    %c0_i32_0 = arith.constant 0 : i32
    %c0_i32_1 = arith.constant 0 : i32
    return %c0_i32, %c0_i32_0 : i32, i32
  }
  func.func @transform_4(%arg0: i32) -> (i32, i32) {
    %c0_i32 = arith.constant 0 : i32
    %c0_i32_0 = arith.constant 0 : i32
    return %c0_i32, %arg0 : i32, i32
  }
}

</mosaic_0001>

<llo_original>
// kernel: tpu_custom_call.1
$region0: #{tpu_custom_call.1}
  #allocation0 [shape = 'u32[]', space=smem, size = 0x4, offset = 0x4, fixed_abs, tag = 'smem constant byte address 0x4 - core index']
  #allocation1 [shape = 'u32[72,128]{1,0:T(1,128)}', space=vmem, size = 0x9000, scoped, tag = 'internal scratch']
  #allocation2 [shape = 'f32[3,128]{1,0:T(4,128)}', space=vmem, size = 0x800, scoped, tag = 'scratch operand']
  %s0 = inlined_call_operand.vmem [shape: f32[2,128], index: 0, kind: input, shape index: {}]
  %s1 = inlined_call_operand.vmem [shape: f32[64,3], index: 1, kind: input, shape index: {}]
  %s2 = inlined_call_operand.vmem [shape: f32[4,64], index: 2, kind: input, shape index: {}]
  %s3 = inlined_call_operand.vmem [shape: f32[4,1], index: 3, kind: input, shape index: {}]
  %s4 = inlined_call_operand.hbm [shape: f32[4,128], index: 4, kind: output, shape index: {}]
  %s5 = sld [smem:[#allocation0]]
  $region26: #{tpu_custom_call.1} parent=0
    _
  %s7 = ssub.s32 1, %s5
  %s8 = scalar_select 0, %s7, %s5
  $region1: #{tpu_custom_call.1} parent=0
    #allocation3 [shape = 'u8[2048]{0}', space=vmem, size = 0x800, scoped, tag = 'output window, operand 0, single buffered']
    #allocation4 [shape = 's32[1]{0}', space=sflag, size = 0x4, scoped, tag = 'scoped memory for tpu_custom_call.1']
    %9 = vsyncpa [#allocation4], 0
    // Predicated region
    $region2: #{tpu_custom_call.1} parent=1 // pred_check
      _
    $region3: #{tpu_custom_call.1} parent=1 // pred_check_branch
      %11 = sbr.rel (0) target = $region5
    $region4: #{tpu_custom_call.1} parent=1 // pred_region
      _
    $region5: #{tpu_custom_call.1} parent=1 // pred_fallthru
      _
    // Predicated region
    $region6: #{tpu_custom_call.1} parent=1 // pred_check
      _
    $region7: #{tpu_custom_call.1} parent=1 // pred_check_branch
      %13 = sbr.rel (0) target = $region9
    $region8: #{tpu_custom_call.1} parent=1 // pred_region
      _
    $region9: #{tpu_custom_call.1} parent=1 // pred_fallthru
      _
    // Predicated region
    $region10: #{tpu_custom_call.1} parent=1 // pred_check
      _
    $region11: #{tpu_custom_call.1} parent=1 // pred_check_branch
      %15 = sbr.rel (0) target = $region13
    $region12: #{tpu_custom_call.1} parent=1 // pred_region
      _
    $region13: #{tpu_custom_call.1} parent=1 // pred_fallthru
      _
    // Predicated region
    $region14: #{tpu_custom_call.1} parent=1 // pred_check
      _
    $region15: #{tpu_custom_call.1} parent=1 // pred_check_branch
      %17 = sbr.rel (0) target = $region17
    $region16: #{tpu_custom_call.1} parent=1 // pred_region
      _
    $region17: #{tpu_custom_call.1} parent=1 // pred_fallthru
      _
    %18 = vst [vmem:[#allocation2 + $0x2] sm:$0x1] 1.0
    %v19 = vld [vmem:[%s1] sm:$0xff]
    %v20 = vld [vmem:[%s1 + $0x8] sm:$0xff]
    %v21 = vld [vmem:[%s1 + $0x10] sm:$0xff]
    %v22 = vld [vmem:[%s1 + $0x18] sm:$0xff]
    %v23 = vld [vmem:[%s1 + $0x20] sm:$0xff]
    %v24 = vld [vmem:[%s1 + $0x28] sm:$0xff]
    %v25 = vld [vmem:[%s1 + $0x30] sm:$0xff]
    %v26 = vld [vmem:[%s1 + $0x38] sm:$0xff]
    %v27 = vld [vmem:[%s2] sm:$0xf]
    %v28 = vld [vmem:[%s3] sm:$0xf]
    %v29 = vld [vmem:[%s0] sm:$0x3]
    %30 = vst [vmem:[#allocation2] sm:$0x3] %v29
    %v31 = vld [vmem:[#allocation2] sm:$0x7]
    %vm32 = vcmask 23552
    %v34 = vsel %vm32, %v19, 0
    %v37 = vsel %vm32, %v20, 0
    %v40 = vsel %vm32, %v21, 0
    %v43 = vsel %vm32, %v22, 0
    %v46 = vsel %vm32, %v23, 0
    %v49 = vsel %vm32, %v24, 0
    %v52 = vsel %vm32, %v25, 0
    %v55 = vsel %vm32, %v26, 0
    %vm57 = vcmask 1042432
    %v59 = vsel %vm57, %v31, 0
    %61 = vmatpush.msra.mxu0 0.0
    %62 = vmatpush.msra.mxu0 0.0
    %63 = vmatpush.msra.mxu0 0.0
    %64 = vmatpush.msra.mxu0 0.0
    %65 = vmatpush.msra.mxu0 0.0
    %66 = vmatpush.msra.mxu0 0.0
    %67 = vmatpush.msra.mxu0 0.0
    %68 = vmatpush.msra.mxu0 0.0
    %69 = vmatpush.msra.mxu0 0.0
    %70 = vmatpush.msra.mxu0 0.0
    %71 = vmatpush.msra.mxu0 0.0
    %72 = vmatpush.msra.mxu0 0.0
    %73 = vmatpush.msra.mxu0 0.0
    %74 = vmatpush.msra.mxu0 0.0
    %75 = vmatpush.msra.mxu0 0.0
    %76 = vmatpush.msra.mxu0 %v59
    %77 = vmatmul.f32.gmra.mxu0 %v34
    %v78 = vpop.f32.mrf.mxu0
    %v79 = vadd.f32 0.0, %v78
    %80 = vmatmul.f32.gmra.mxu0 %v37
    %v81 = vpop.f32.mrf.mxu0
    %v82 = vadd.f32 0.0, %v81
    %83 = vmatmul.f32.gmra.mxu0 %v40
    %v84 = vpop.f32.mrf.mxu0
    %v85 = vadd.f32 0.0, %v84
    %86 = vmatmul.f32.gmra.mxu0 %v43
    %v87 = vpop.f32.mrf.mxu0
    %v88 = vadd.f32 0.0, %v87
    %89 = vmatmul.f32.gmra.mxu0 %v46
    %v90 = vpop.f32.mrf.mxu0
    %v91 = vadd.f32 0.0, %v90
    %92 = vmatmul.f32.gmra.mxu0 %v49
    %v93 = vpop.f32.mrf.mxu0
    %v94 = vadd.f32 0.0, %v93
    %95 = vmatmul.f32.gmra.mxu0 %v52
    %v96 = vpop.f32.mrf.mxu0
    %v97 = vadd.f32 0.0, %v96
    %98 = vmatmul.f32.gmra.mxu0 %v55
    %v99 = vpop.f32.mrf.mxu0
    %v100 = vadd.f32 0.0, %v99
    %101 = vdwg.mxu0
    %v102 = vmax.f32 %v79, 0.0
    %v103 = vmax.f32 %v82, 0.0
    %v104 = vmax.f32 %v85, 0.0
    %v105 = vmax.f32 %v88, 0.0
    %v106 = vmax.f32 %v91, 0.0
    %v107 = vmax.f32 %v94, 0.0
    %v108 = vmax.f32 %v97, 0.0
    %v109 = vmax.f32 %v100, 0.0
    %111 = vset.pattern.permute.xlu0 0
    %112 = vperm.xlu0 %111, %v28
    %v113 = vpop.permute.xlu0 %112
    %vm115 = vcmask 523264
    %v117 = vsel %vm115, %v27, 0
    %119 = vmatpush.msra.mxu0 0.0
    %120 = vmatpush.msra.mxu0 0.0
    %121 = vmatpush.msra.mxu0 0.0
    %122 = vmatpush.msra.mxu0 0.0
    %123 = vmatpush.msra.mxu0 0.0
    %124 = vmatpush.msra.mxu0 0.0
    %125 = vmatpush.msra.mxu0 0.0
    %126 = vmatpush.msra.mxu0 0.0
    %127 = vmatpush.msra.mxu0 %v109
    %128 = vmatpush.msra.mxu0 %v108
    %129 = vmatpush.msra.mxu0 %v107
    %130 = vmatpush.msra.mxu0 %v106
    %131 = vmatpush.msra.mxu0 %v105
    %132 = vmatpush.msra.mxu0 %v104
    %133 = vmatpush.msra.mxu0 %v103
    %134 = vmatpush.msra.mxu0 %v102
    %135 = vmatmul.f32.gmra.mxu0 %v117
    %v136 = vpop.f32.mrf.mxu0
    %v137 = vadd.f32 %v113, %v136
    %138 = vdwg.mxu0
    %139 = vst [vmem:[#allocation3] sm:$0xf] %v137
    // Predicated region
    $region18: #{tpu_custom_call.1} parent=1 // pred_check
      _
    $region19: #{tpu_custom_call.1} parent=1 // pred_check_branch
      %141 = sbr.rel (0) target = $region21
    $region20: #{tpu_custom_call.1} parent=1 // pred_region
      %143 = vsyncadd [#allocation4], 0
      %s145 = sshll.u32 [#allocation3], 4
      %s146 = int_to_ptr.vmem [resolvable:$true] %s145
      %s147 = sshll.u32 %s4, 4
      %s148 = int_to_ptr.hbm [resolvable:$true] %s147
      %150 = dma.vmem_to_hbm [thread:$0]  %s146, 64, %s148, [#allocation4]
    $region21: #{tpu_custom_call.1} parent=1 // pred_fallthru
      _
    // Predicated region
    $region22: #{tpu_custom_call.1} parent=1 // pred_check
      _
    $region23: #{tpu_custom_call.1} parent=1 // pred_check_branch
      %152 = sbr.rel (0) target = $region25
    $region24: #{tpu_custom_call.1} parent=1 // pred_region
      %154 = dma.done [#allocation4], 64
    $region25: #{tpu_custom_call.1} parent=1 // pred_fallthru
      _
    %155 = vsyncpa [#allocation4], 1

</llo_original>
